<compile_context>
chip_gen: v7x
topology: tpu7x:2x2x1
jax: 0.10.0
libtpu: 0.0.40
codegen_flags: <defaults>
</compile_context>

<pallas_src>
import functools

import jax
import jax.numpy as jnp
from jax.experimental import pallas as pl
from jax.experimental.pallas import tpu as pltpu

_LANE = 128


def _bahdanau_kernel(x_ref, w_ref, v_ref, o_ref, *, mxu_bf16):
    # x_ref: (bt, N, Ep)  batch tile of B, last dim zero-padded E -> Ep (lane-dense)
    # w_ref: (Ep, E)      W.T with zero-padded rows, so x_pad @ w_ref == x @ W.T
    # v_ref: (1, E)       learned score vector v
    # o_ref: (bt, N, Ep)  padded context C (full-lane, unmasked stores)
    bt, n, ep = x_ref.shape
    e = w_ref.shape[1]
    x = x_ref[...]                                   # (bt, N, Ep)

    # Single fused projection matmul for the whole batch tile (one MXU call,
    # K = Ep = 128 is a well-shaped contraction).  Padded lanes of x are zero
    # and padded rows of w are zero, so the result equals x[:, :, :E] @ W.T.
    x2 = x.reshape(bt * n, ep)
    if mxu_bf16:
        wx = jnp.dot(x2.astype(jnp.bfloat16), w_ref[...].astype(jnp.bfloat16),
                     preferred_element_type=jnp.float32)
    else:
        wx = jnp.dot(x2, w_ref[...], preferred_element_type=jnp.float32)
    wx3 = wx.reshape(bt, n, e)                       # (bt, N, E) f32

    # alignment[b, i, j] = sum_e v[e] * tanh(Wx[b, i, e] + Wx[b, j, e])
    t4 = jnp.tanh(wx3[:, :, None, :] + wx3[:, None, :, :])   # (bt, N, N, E) f32
    scores = jnp.sum(v_ref[...] * t4, axis=-1)                # (bt, N, N)

    # Softmax over the key axis j — exact reciprocal (tiny denominator count).
    m = jnp.max(scores, axis=-1, keepdims=True)
    p = jnp.exp(scores - m)
    attn = p / jnp.sum(p, axis=-1, keepdims=True)

    # C = attn @ B (batched).  Done against the padded x so the stored slab is
    # full-lane; padded output lanes come out exactly zero.
    if mxu_bf16:
        c = jnp.einsum("bij,bje->bie", attn.astype(jnp.bfloat16),
                       x.astype(jnp.bfloat16),
                       preferred_element_type=jnp.float32)
    else:
        c = jnp.einsum("bij,bje->bie", attn, x.astype(jnp.float32),
                       preferred_element_type=jnp.float32)
    o_ref[...] = c.astype(o_ref.dtype)


def bahdanau_self_attention(B, W, v, *, batch_tile=None, mxu_bf16=False):
    """Bahdanau self-attention head.

    B: (bs, N, E) inputs; W: (E, E) torch nn.Linear weight (out, in), no bias;
    v: (E,) score vector.  Returns C: (bs, N, E).

    batch_tile: batch rows per grid step.  Default = whole batch, auto-capped
      so the f32 (bt, N, N, E) tanh working set stays within ~2 MiB.  The
      kernel is fixed-overhead bound until bt*N reaches ~128 rows (v5e) /
      ~256 rows (v6e/v7x), so prefer the largest tile that fits the budget.
      Only split the batch across grid steps (the axis is "parallel", so
      megacore/v7x shards it) when each per-core tile still carries at least
      that much work — at tiny batches a split only adds per-step overhead.
    mxu_bf16: cast MXU operands (projection + context matmul) to bf16 with
      f32 accumulation — native fast path on v6e/v7x; adds ~1e-2 relative
      rounding to the projection, so it is opt-in.
    """
    bs, N, E = B.shape

    if batch_tile is None:
        # Largest divisor of bs keeping the f32 tanh intermediate <= ~2 MiB.
        tanh_budget = 2 << 20
        bt = bs
        while bt > 1 and bt * N * N * E * 4 > tanh_budget:
            bt -= 1
            while bs % bt:
                bt -= 1
        batch_tile = bt
    assert bs % batch_tile == 0
    grid = (bs // batch_tile,)

    # Lane-dense padding of the channel axis (E -> Ep, multiple of 128) so the
    # output store is an unmasked full-lane vst instead of a 25%-occupancy
    # masked store.  Zero padding keeps numerics identical; wrapper slices it
    # back off.  No-op if E is already a multiple of 128.
    E_pad = max(_LANE, ((E + _LANE - 1) // _LANE) * _LANE)
    if E_pad != E:
        B_in = jnp.pad(B, ((0, 0), (0, 0), (0, E_pad - E)))
    else:
        B_in = B
    w_t = W.T                                  # x @ w_t == x @ W.T (torch Linear)
    w_in = jnp.pad(w_t, ((0, E_pad - E), (0, 0))) if E_pad != E else w_t  # (Ep, E)
    v2 = v.reshape(1, E)

    # VMEM budget: double-buffered in/out blocks + invariant params + f32
    # working set (wx, tanh, scores/attn, context).  Capped at 64 MiB so the
    # same batch_tile stays inside v7x's smaller physical VMEM.
    itemsize = jnp.dtype(B.dtype).itemsize
    io_block = batch_tile * N * E_pad * itemsize
    param_block = E_pad * E * 4 + E * 4
    f32_work = 4 * batch_tile * N * (E + N * E + 3 * N + E_pad)
    vmem_est = 2 * (2 * io_block + param_block) + f32_work
    vmem_limit = min(64 << 20, max(32 << 20, 2 * vmem_est))

    kernel = functools.partial(_bahdanau_kernel, mxu_bf16=mxu_bf16)

    out_pad = pl.pallas_call(
        kernel,
        out_shape=jax.ShapeDtypeStruct((bs, N, E_pad), B.dtype),
        grid_spec=pl.GridSpec(
            grid=grid,
            in_specs=[
                pl.BlockSpec((batch_tile, N, E_pad), lambda i: (i, 0, 0)),
                # W.T (padded) and v are grid-invariant and tiny at E=32; they
                # stay resident.  (pl.Buffered(1) only worth it if E grows.)
                pl.BlockSpec((E_pad, E), lambda i: (0, 0)),
                pl.BlockSpec((1, E), lambda i: (0, 0)),
            ],
            out_specs=pl.BlockSpec((batch_tile, N, E_pad), lambda i: (i, 0, 0)),
        ),
        compiler_params=pltpu.CompilerParams(
            dimension_semantics=("parallel",),
            vmem_limit_bytes=vmem_limit),
    )(B_in, w_in, v2)

    return out_pad[:, :, :E] if E_pad != E else out_pad


def _reference(B, W, v):
    # Pure-JAX reference mirroring the PyTorch forward exactly.
    Wi = jnp.einsum("bne,oe->bno", B, W)                 # Linear, no bias
    scores = jnp.tanh(Wi[:, None, :, :] + Wi[:, :, None, :])
    scores = jnp.sum(v * scores, axis=-1)
    attn = jax.nn.softmax(scores, axis=-1)
    return jnp.einsum("bij,bje->bie", attn, B)


if __name__ == "__main__":
    batch, num_classes, embedding_size = 2, 8, 32

    key = jax.random.PRNGKey(0)
    k_b, k_w, k_v = jax.random.split(key, 3)

    # Deterministic parameter init (shapes from module __init__):
    #   W: nn.Linear(E, E, bias=False) -> weight (E, E)
    #   v: nn.Parameter(torch.rand(E)) -> uniform [0, 1)
    bound = 1.0 / (embedding_size ** 0.5)
    W = jax.random.uniform(k_w, (embedding_size, embedding_size),
                           jnp.float32, -bound, bound)
    v = jax.random.uniform(k_v, (embedding_size,), jnp.float32, 0.0, 1.0)

    B = jax.random.normal(k_b, (batch, num_classes, embedding_size), jnp.float32)

    out = jax.block_until_ready(bahdanau_self_attention(B, W, v))
    ref = _reference(B, W, v)

    assert out.shape == (batch, num_classes, embedding_size)
    # Exact softmax reciprocal (no approx) -> tight tolerance again.
    assert jnp.allclose(out, ref, atol=2e-4, rtol=2e-4), float(
        jnp.max(jnp.abs(out - ref)))

    print("KERNEL_OK")
</pallas_src>

<mosaic_0001>
module attributes {stable_mosaic.version = 11 : i64} {
  func.func @_bahdanau_kernel(%arg0: i32, %arg1: memref<2x8x128xf32, #tpu.memory_space<vmem>>, %arg2: memref<128x32xf32, #tpu.memory_space<vmem>>, %arg3: memref<1x32xf32, #tpu.memory_space<vmem>>, %arg4: memref<2x8x128xf32, #tpu.memory_space<vmem>>) attributes {dimension_semantics = [#tpu.dimension_semantics<parallel>], iteration_bounds = array<i64: 1>, scalar_prefetch = 0 : i64, scratch_operands = 0 : i64, tpu.core_type = #tpu.core_type<tc>, window_params = [{transform_indices = @transform_0, window_bounds = array<i64: 2, 8, 128>}, {pipeline_mode = #tpu.pipeline_mode<synchronous>, transform_indices = @transform_1, window_bounds = array<i64: 128, 32>}, {pipeline_mode = #tpu.pipeline_mode<synchronous>, transform_indices = @transform_2, window_bounds = array<i64: 1, 32>}, {transform_indices = @transform_3, window_bounds = array<i64: 2, 8, 128>}]} {
    %c0 = arith.constant 0 : index
    %c0_0 = arith.constant 0 : index
    %c0_1 = arith.constant 0 : index
    %0 = vector.load %arg1[%c0, %c0_0, %c0_1] : memref<2x8x128xf32, #tpu.memory_space<vmem>>, vector<2x8x128xf32>
    %1 = vector.shape_cast %0 : vector<2x8x128xf32> to vector<16x128xf32>
    %c0_2 = arith.constant 0 : index
    %c0_3 = arith.constant 0 : index
    %2 = vector.load %arg2[%c0_2, %c0_3] : memref<128x32xf32, #tpu.memory_space<vmem>>, vector<128x32xf32>
    %cst = arith.constant dense<0.000000e+00> : vector<16x32xf32>
    %3 = tpu.matmul %1, %2, %cst {dimension_numbers = #tpu.dot_dimension_numbers<[1], [0], [0], [1], [0, 0, 1, 1], [], []>} : vector<16x128xf32>, vector<128x32xf32>, vector<16x32xf32> -> vector<16x32xf32>
    %4 = vector.shape_cast %3 : vector<16x32xf32> to vector<2x8x32xf32>
    %5 = vector.shape_cast %4 : vector<2x8x32xf32> to vector<2x8x1x32xf32>
    %6 = vector.shape_cast %4 : vector<2x8x32xf32> to vector<2x1x8x32xf32>
    %7 = vector.broadcast %5 : vector<2x8x1x32xf32> to vector<2x8x8x32xf32>
    %8 = vector.broadcast %6 : vector<2x1x8x32xf32> to vector<2x8x8x32xf32>
    %9 = arith.addf %7, %8 : vector<2x8x8x32xf32>
    %10 = math.tanh %9 : vector<2x8x8x32xf32>
    %c0_4 = arith.constant 0 : index
    %c0_5 = arith.constant 0 : index
    %11 = vector.load %arg3[%c0_4, %c0_5] : memref<1x32xf32, #tpu.memory_space<vmem>>, vector<1x32xf32>
    %12 = vector.shape_cast %11 : vector<1x32xf32> to vector<1x1x1x32xf32>
    %13 = vector.broadcast %12 : vector<1x1x1x32xf32> to vector<2x8x8x32xf32>
    %14 = arith.mulf %13, %10 : vector<2x8x8x32xf32>
    %cst_6 = arith.constant dense<0.000000e+00> : vector<2x8x8xf32>
    %15 = vector.multi_reduction <add>, %14, %cst_6 [3] : vector<2x8x8x32xf32> to vector<2x8x8xf32>
    %cst_7 = arith.constant dense<0xFF800000> : vector<2x8xf32>
    %16 = vector.multi_reduction <maximumf>, %15, %cst_7 [2] : vector<2x8x8xf32> to vector<2x8xf32>
    %17 = vector.shape_cast %16 : vector<2x8xf32> to vector<2x8x1xf32>
    %18 = vector.broadcast %17 : vector<2x8x1xf32> to vector<2x8x8xf32>
    %19 = arith.subf %15, %18 : vector<2x8x8xf32>
    %20 = math.exp %19 : vector<2x8x8xf32>
    %cst_8 = arith.constant dense<0.000000e+00> : vector<2x8xf32>
    %21 = vector.multi_reduction <add>, %20, %cst_8 [2] : vector<2x8x8xf32> to vector<2x8xf32>
    %22 = vector.shape_cast %21 : vector<2x8xf32> to vector<2x8x1xf32>
    %23 = vector.broadcast %22 : vector<2x8x1xf32> to vector<2x8x8xf32>
    %24 = arith.divf %20, %23 : vector<2x8x8xf32>
    "tpu.trace_start"() <{level = 10 : i32, message = "bij,bje->bie"}> : () -> ()
    %cst_9 = arith.constant dense<0.000000e+00> : vector<2x8x128xf32>
    %25 = tpu.matmul %24, %0, %cst_9 {dimension_numbers = #tpu.dot_dimension_numbers<[2], [1], [1], [2], [0, 0, 0, 1, 1, 2], [0], [0]>} : vector<2x8x8xf32>, vector<2x8x128xf32>, vector<2x8x128xf32> -> vector<2x8x128xf32>
    "tpu.trace_stop"() : () -> ()
    %c0_10 = arith.constant 0 : index
    %c0_11 = arith.constant 0 : index
    %c0_12 = arith.constant 0 : index
    %26 = vector.load %arg4[%c0_10, %c0_11, %c0_12] : memref<2x8x128xf32, #tpu.memory_space<vmem>>, vector<2x8x128xf32>
    tpu.vector_store %arg4[%c0_10, %c0_11, %c0_12], %25 {strides = array<i32>} : memref<2x8x128xf32, #tpu.memory_space<vmem>>, vector<2x8x128xf32>,
    return
  }
  func.func @transform_0(%arg0: i32) -> (i32, i32, i32) {
    %c0_i32 = arith.constant 0 : i32
    %c0_i32_0 = arith.constant 0 : i32
    %c0_i32_1 = arith.constant 0 : i32
    return %arg0, %c0_i32, %c0_i32_0 : i32, i32, i32
  }
  func.func @transform_1(%arg0: i32) -> (i32, i32) {
    %c0_i32 = arith.constant 0 : i32
    %c0_i32_0 = arith.constant 0 : i32
    %c0_i32_1 = arith.constant 0 : i32
    return %c0_i32, %c0_i32_0 : i32, i32
  }
  func.func @transform_2(%arg0: i32) -> (i32, i32) {
    %c0_i32 = arith.constant 0 : i32
    %c0_i32_0 = arith.constant 0 : i32
    %c0_i32_1 = arith.constant 0 : i32
    return %c0_i32, %c0_i32_0 : i32, i32
  }
  func.func @transform_3(%arg0: i32) -> (i32, i32, i32) {
    %c0_i32 = arith.constant 0 : i32
    %c0_i32_0 = arith.constant 0 : i32
    %c0_i32_1 = arith.constant 0 : i32
    return %arg0, %c0_i32, %c0_i32_0 : i32, i32, i32
  }
}

</mosaic_0001>

<llo_original>
// kernel: tpu_custom_call.1
$region0: #{tpu_custom_call.1}
  #allocation0 [shape = 'u32[]', space=smem, size = 0x4, offset = 0x4, fixed_abs, tag = 'smem constant byte address 0x4 - core index']
  #allocation1 [shape = 'u32[144,128]{1,0:T(1,128)}', space=vmem, size = 0x12000, scoped, tag = 'internal scratch']
  %s0 = inlined_call_operand.vmem [shape: f32[2,8,128], index: 0, kind: input, shape index: {}]
  %s1 = inlined_call_operand.vmem [shape: f32[128,32], index: 1, kind: input, shape index: {}]
  %s2 = inlined_call_operand.vmem [shape: f32[1,32], index: 2, kind: input, shape index: {}]
  %s3 = inlined_call_operand.hbm [shape: f32[2,8,128], index: 3, kind: output, shape index: {}]
  %s4 = sld [smem:[#allocation0]]
  $region22: #{tpu_custom_call.1} parent=0
    _
  %s6 = ssub.s32 1, %s4
  %s7 = scalar_select 0, %s6, %s4
  $region1: #{tpu_custom_call.1} parent=0
    #allocation2 [shape = 'u8[8192]{0}', space=vmem, size = 0x2000, scoped, tag = 'output window, operand 0, single buffered']
    #allocation3 [shape = 's32[1]{0}', space=sflag, size = 0x4, scoped, tag = 'scoped memory for tpu_custom_call.1']
    %8 = vsyncpa [#allocation3], 0
    // Predicated region
    $region2: #{tpu_custom_call.1} parent=1 // pred_check
      _
    $region3: #{tpu_custom_call.1} parent=1 // pred_check_branch
      %10 = sbr.rel (0) target = $region5
    $region4: #{tpu_custom_call.1} parent=1 // pred_region
      _
    $region5: #{tpu_custom_call.1} parent=1 // pred_fallthru
      _
    // Predicated region
    $region6: #{tpu_custom_call.1} parent=1 // pred_check
      _
    $region7: #{tpu_custom_call.1} parent=1 // pred_check_branch
      %12 = sbr.rel (0) target = $region9
    $region8: #{tpu_custom_call.1} parent=1 // pred_region
      _
    $region9: #{tpu_custom_call.1} parent=1 // pred_fallthru
      _
    // Predicated region
    $region10: #{tpu_custom_call.1} parent=1 // pred_check
      _
    $region11: #{tpu_custom_call.1} parent=1 // pred_check_branch
      %14 = sbr.rel (0) target = $region13
    $region12: #{tpu_custom_call.1} parent=1 // pred_region
      _
    $region13: #{tpu_custom_call.1} parent=1 // pred_fallthru
      _
    %v15 = vld [vmem:[%s0] sm:$0xff]
    %v16 = vld [vmem:[%s0 + $0x8] sm:$0xff]
    %v17 = vld [vmem:[%s1] sm:$0xff]
    %v18 = vld [vmem:[%s1 + $0x8] sm:$0xff]
    %v19 = vld [vmem:[%s1 + $0x10] sm:$0xff]
    %v20 = vld [vmem:[%s1 + $0x18] sm:$0xff]
    %v21 = vld [vmem:[%s1 + $0x20] sm:$0xff]
    %v22 = vld [vmem:[%s1 + $0x28] sm:$0xff]
    %v23 = vld [vmem:[%s1 + $0x30] sm:$0xff]
    %v24 = vld [vmem:[%s1 + $0x38] sm:$0xff]
    %v25 = vld [vmem:[%s1 + $0x40] sm:$0xff]
    %v26 = vld [vmem:[%s1 + $0x48] sm:$0xff]
    %v27 = vld [vmem:[%s1 + $0x50] sm:$0xff]
    %v28 = vld [vmem:[%s1 + $0x58] sm:$0xff]
    %v29 = vld [vmem:[%s1 + $0x60] sm:$0xff]
    %v30 = vld [vmem:[%s1 + $0x68] sm:$0xff]
    %v31 = vld [vmem:[%s1 + $0x70] sm:$0xff]
    %v32 = vld [vmem:[%s1 + $0x78] sm:$0xff]
    %33 = vmatprep.subr.mxu0 0.0
    %34 = vmatpush1.msra.mxu0 %v17
    %35 = vmatprep.subr.mxu0 0.0
    %36 = vmatpush1.msra.mxu0 %v18
    %37 = vmatprep.subr.mxu0 0.0
    %38 = vmatpush1.msra.mxu0 %v19
    %39 = vmatprep.subr.mxu0 0.0
    %40 = vmatpush1.msra.mxu0 %v20
    %41 = vmatprep.subr.mxu0 0.0
    %42 = vmatpush1.msra.mxu0 %v21
    %43 = vmatprep.subr.mxu0 0.0
    %44 = vmatpush1.msra.mxu0 %v22
    %45 = vmatprep.subr.mxu0 0.0
    %46 = vmatpush1.msra.mxu0 %v23
    %47 = vmatprep.subr.mxu0 0.0
    %48 = vmatpush1.msra.mxu0 %v24
    %49 = vmatprep.subr.mxu0 0.0
    %50 = vmatpush1.msra.mxu0 %v25
    %51 = vmatprep.subr.mxu0 0.0
    %52 = vmatpush1.msra.mxu0 %v26
    %53 = vmatprep.subr.mxu0 0.0
    %54 = vmatpush1.msra.mxu0 %v27
    %55 = vmatprep.subr.mxu0 0.0
    %56 = vmatpush1.msra.mxu0 %v28
    %57 = vmatprep.subr.mxu0 0.0
    %58 = vmatpush1.msra.mxu0 %v29
    %59 = vmatprep.subr.mxu0 0.0
    %60 = vmatpush1.msra.mxu0 %v30
    %61 = vmatprep.subr.mxu0 0.0
    %62 = vmatpush1.msra.mxu0 %v31
    %63 = vmatprep.subr.mxu0 0.0
    %64 = vmatpush1.msra.mxu0 %v32
    %65 = vmatprep.subr.mxu0 0.0
    %66 = vmatpush1.msra.mxu0 0.0
    %67 = vmatprep.subr.mxu0 0.0
    %68 = vmatpush1.msra.mxu0 0.0
    %69 = vmatprep.subr.mxu0 0.0
    %70 = vmatpush1.msra.mxu0 0.0
    %71 = vmatprep.subr.mxu0 0.0
    %72 = vmatpush1.msra.mxu0 0.0
    %73 = vmatprep.subr.mxu0 0.0
    %74 = vmatpush1.msra.mxu0 0.0
    %75 = vmatprep.subr.mxu0 0.0
    %76 = vmatpush1.msra.mxu0 0.0
    %77 = vmatprep.subr.mxu0 0.0
    %78 = vmatpush1.msra.mxu0 0.0
    %79 = vmatprep.subr.mxu0 0.0
    %80 = vmatpush1.msra.mxu0 0.0
    %81 = vmatprep.subr.mxu0 0.0
    %82 = vmatpush1.msra.mxu0 0.0
    %83 = vmatprep.subr.mxu0 0.0
    %84 = vmatpush1.msra.mxu0 0.0
    %85 = vmatprep.subr.mxu0 0.0
    %86 = vmatpush1.msra.mxu0 0.0
    %87 = vmatprep.subr.mxu0 0.0
    %88 = vmatpush1.msra.mxu0 0.0
    %89 = vmatprep.subr.mxu0 0.0
    %90 = vmatpush1.msra.mxu0 0.0
    %91 = vmatprep.subr.mxu0 0.0
    %92 = vmatpush1.msra.mxu0 0.0
    %93 = vmatprep.subr.mxu0 0.0
    %94 = vmatpush1.msra.mxu0 0.0
    %95 = vmatprep.subr.mxu0 0.0
    %96 = vmatpush1.msra.mxu0 0.0
    %97 = vmatprep.mubr.f32.mxu0 0.0
    %98 = vmatmul.mubr.f32.gmra.mrb[0].mxu0 %v15
    %v99 = vpop.f32.mrb[0].mxu0
    %v100 = vadd.f32 0.0, %v99
    %v101 = vpop.f32.mrb[0].mxu0
    %102 = vmatprep.mubr.f32.mxu0 0.0
    %103 = vmatmul.mubr.f32.gmra.mrb[0].mxu0 %v16
    %v104 = vpop.f32.mrb[0].mxu0
    %v105 = vadd.f32 0.0, %v104
    %v106 = vpop.f32.mrb[0].mxu0
    %107 = vdwg.mxu0
    %v110 = vcombine.high %v100, %v100
    %v112 = vunpack.c.l.s4 1966171168
    %v113 = vunpack.c.0.s8 %v112
    %v114 = vlaneseq
    %v115 = vshrl.u32 %v114, 7
    %v116 = vsub.s32 %v113, %v115
    %v117 = vrot.slane %v100, %v116
    %v119 = vunpack.c.l.s4 1966171168
    %v120 = vunpack.c.0.s8 %v119
    %v121 = vlaneseq
    %v122 = vshrl.u32 %v121, 7
    %v123 = vsub.s32 %v120, %v122
    %v124 = vrot.slane %v110, %v123
    %v125 = vcombine.high %v117, %v117
    %v126 = vcombine.high %v124, %v124
    %v128 = vunpack.c.l.s4 1966171168
    %v129 = vunpack.c.0.s8 %v128
    %v130 = vlaneseq
    %v131 = vshrl.u32 %v130, 7
    %v132 = vsub.s32 %v129, %v131
    %v133 = vrot.slane %v117, %v132
    %v135 = vunpack.c.l.s4 1966171168
    %v136 = vunpack.c.0.s8 %v135
    %v137 = vlaneseq
    %v138 = vshrl.u32 %v137, 7
    %v139 = vsub.s32 %v136, %v138
    %v140 = vrot.slane %v124, %v139
    %v142 = vunpack.c.l.s4 1966171168
    %v143 = vunpack.c.0.s8 %v142
    %v144 = vlaneseq
    %v145 = vshrl.u32 %v144, 7
    %v146 = vsub.s32 %v143, %v145
    %v147 = vrot.slane %v125, %v146
    %v149 = vunpack.c.l.s4 1966171168
    %v150 = vunpack.c.0.s8 %v149
    %v151 = vlaneseq
    %v152 = vshrl.u32 %v151, 7
    %v153 = vsub.s32 %v150, %v152
    %v154 = vrot.slane %v126, %v153
    %v155 = vcombine.high %v133, %v133
    %v156 = vcombine.high %v140, %v140
    %v157 = vcombine.high %v147, %v147
    %v158 = vcombine.high %v154, %v154
    %v159 = vcombine.high %v105, %v105
    %v161 = vunpack.c.l.s4 1966171168
    %v162 = vunpack.c.0.s8 %v161
    %v163 = vlaneseq
    %v164 = vshrl.u32 %v163, 7
    %v165 = vsub.s32 %v162, %v164
    %v166 = vrot.slane %v105, %v165
    %v168 = vunpack.c.l.s4 1966171168
    %v169 = vunpack.c.0.s8 %v168
    %v170 = vlaneseq
    %v171 = vshrl.u32 %v170, 7
    %v172 = vsub.s32 %v169, %v171
    %v173 = vrot.slane %v159, %v172
    %v174 = vcombine.high %v166, %v166
    %v175 = vcombine.high %v173, %v173
    %v177 = vunpack.c.l.s4 1966171168
    %v178 = vunpack.c.0.s8 %v177
    %v179 = vlaneseq
    %v180 = vshrl.u32 %v179, 7
    %v181 = vsub.s32 %v178, %v180
    %v182 = vrot.slane %v166, %v181
    %v184 = vunpack.c.l.s4 1966171168
    %v185 = vunpack.c.0.s8 %v184
    %v186 = vlaneseq
    %v187 = vshrl.u32 %v186, 7
    %v188 = vsub.s32 %v185, %v187
    %v189 = vrot.slane %v173, %v188
    %v191 = vunpack.c.l.s4 1966171168
    %v192 = vunpack.c.0.s8 %v191
    %v193 = vlaneseq
    %v194 = vshrl.u32 %v193, 7
    %v195 = vsub.s32 %v192, %v194
    %v196 = vrot.slane %v174, %v195
    %v198 = vunpack.c.l.s4 1966171168
    %v199 = vunpack.c.0.s8 %v198
    %v200 = vlaneseq
    %v201 = vshrl.u32 %v200, 7
    %v202 = vsub.s32 %v199, %v201
    %v203 = vrot.slane %v175, %v202
    %v204 = vcombine.high %v182, %v182
    %v205 = vcombine.high %v189, %v189
    %v206 = vcombine.high %v196, %v196
    %v207 = vcombine.high %v203, %v203
    %v208 = vlaneseq
    %v209 = vshrl.u32 %v208, 7
    %v210 = vsub.s32 0, %v209
    %v211 = vrot.slane %v133, %v210
    %v212 = vlaneseq
    %v213 = vshrl.u32 %v212, 7
    %v214 = vsub.s32 0, %v213
    %v215 = vrot.slane %v147, %v214
    %v216 = vlaneseq
    %v217 = vshrl.u32 %v216, 7
    %v218 = vsub.s32 0, %v217
    %v219 = vrot.slane %v155, %v218
    %v220 = vlaneseq
    %v221 = vshrl.u32 %v220, 7
    %v222 = vsub.s32 0, %v221
    %v223 = vrot.slane %v157, %v222
    %v224 = vlaneseq
    %v225 = vshrl.u32 %v224, 7
    %v226 = vsub.s32 0, %v225
    %v227 = vrot.slane %v140, %v226
    %v228 = vlaneseq
    %v229 = vshrl.u32 %v228, 7
    %v230 = vsub.s32 0, %v229
    %v231 = vrot.slane %v154, %v230
    %v232 = vlaneseq
    %v233 = vshrl.u32 %v232, 7
    %v234 = vsub.s32 0, %v233
    %v235 = vrot.slane %v156, %v234
    %v236 = vlaneseq
    %v237 = vshrl.u32 %v236, 7
    %v238 = vsub.s32 0, %v237
    %v239 = vrot.slane %v158, %v238
    %v240 = vlaneseq
    %v241 = vshrl.u32 %v240, 7
    %v242 = vsub.s32 0, %v241
    %v243 = vrot.slane %v182, %v242
    %v244 = vlaneseq
    %v245 = vshrl.u32 %v244, 7
    %v246 = vsub.s32 0, %v245
    %v247 = vrot.slane %v196, %v246
    %v248 = vlaneseq
    %v249 = vshrl.u32 %v248, 7
    %v250 = vsub.s32 0, %v249
    %v251 = vrot.slane %v204, %v250
    %v252 = vlaneseq
    %v253 = vshrl.u32 %v252, 7
    %v254 = vsub.s32 0, %v253
    %v255 = vrot.slane %v206, %v254
    %v256 = vlaneseq
    %v257 = vshrl.u32 %v256, 7
    %v258 = vsub.s32 0, %v257
    %v259 = vrot.slane %v189, %v258
    %v260 = vlaneseq
    %v261 = vshrl.u32 %v260, 7
    %v262 = vsub.s32 0, %v261
    %v263 = vrot.slane %v203, %v262
    %v264 = vlaneseq
    %v265 = vshrl.u32 %v264, 7
    %v266 = vsub.s32 0, %v265
    %v267 = vrot.slane %v205, %v266
    %v268 = vlaneseq
    %v269 = vshrl.u32 %v268, 7
    %v270 = vsub.s32 0, %v269
    %v271 = vrot.slane %v207, %v270
    %v288 = vadd.f32 %v211, %v100
    %v289 = vadd.f32 %v215, %v100
    %v290 = vadd.f32 %v219, %v100
    %v291 = vadd.f32 %v223, %v100
    %v292 = vadd.f32 %v227, %v100
    %v293 = vadd.f32 %v231, %v100
    %v294 = vadd.f32 %v235, %v100
    %v295 = vadd.f32 %v239, %v100
    %v296 = vadd.f32 %v243, %v105
    %v297 = vadd.f32 %v247, %v105
    %v298 = vadd.f32 %v251, %v105
    %v299 = vadd.f32 %v255, %v105
    %v300 = vadd.f32 %v259, %v105
    %v301 = vadd.f32 %v263, %v105
    %v302 = vadd.f32 %v267, %v105
    %v303 = vadd.f32 %v271, %v105
    %v304 = vtanh.pop %v288
    %v305 = vtanh.pop %v289
    %v306 = vtanh.pop %v290
    %v307 = vtanh.pop %v291
    %v308 = vtanh.pop %v292
    %v309 = vtanh.pop %v293
    %v310 = vtanh.pop %v294
    %v311 = vtanh.pop %v295
    %v312 = vtanh.pop %v296
    %v313 = vtanh.pop %v297
    %v314 = vtanh.pop %v298
    %v315 = vtanh.pop %v299
    %v316 = vtanh.pop %v300
    %v317 = vtanh.pop %v301
    %v318 = vtanh.pop %v302
    %v319 = vtanh.pop %v303
    %v320 = vld [vmem:[%s2] sm:$0x1]
    %v322 = vlaneseq
    %v323 = vshrl.u32 %v322, 7
    %v324 = vsub.s32 0, %v323
    %v325 = vrot.slane %v320, %v324
    %v327 = vmul.f32 %v325, %v304
    %v328 = vmul.f32 %v325, %v305
    %v329 = vmul.f32 %v325, %v306
    %v330 = vmul.f32 %v325, %v307
    %v331 = vmul.f32 %v325, %v308
    %v332 = vmul.f32 %v325, %v309
    %v333 = vmul.f32 %v325, %v310
    %v334 = vmul.f32 %v325, %v311
    %v335 = vmul.f32 %v325, %v312
    %v336 = vmul.f32 %v325, %v313
    %v337 = vmul.f32 %v325, %v314
    %v338 = vmul.f32 %v325, %v315
    %v339 = vmul.f32 %v325, %v316
    %v340 = vmul.f32 %v325, %v317
    %v341 = vmul.f32 %v325, %v318
    %v342 = vmul.f32 %v325, %v319
    %vm343 = vcmask 261120
    %v344 = vsel %vm343, %v327, 0.0
    %345 = vadd.xlane.f32.xlu0 %v344
    %v346 = vpop.xlane.xlu0 %345
    %v347 = vsel %vm343, %v328, 0.0
    %348 = vadd.xlane.f32.xlu0 %v347
    %v349 = vpop.xlane.xlu0 %348
    %v350 = vsel %vm343, %v329, 0.0
    %351 = vadd.xlane.f32.xlu0 %v350
    %v352 = vpop.xlane.xlu0 %351
    %v353 = vsel %vm343, %v330, 0.0
    %354 = vadd.xlane.f32.xlu0 %v353
    %v355 = vpop.xlane.xlu0 %354
    %v356 = vsel %vm343, %v331, 0.0
    %357 = vadd.xlane.f32.xlu0 %v356
    %v358 = vpop.xlane.xlu0 %357
    %v359 = vsel %vm343, %v332, 0.0
    %360 = vadd.xlane.f32.xlu0 %v359
    %v361 = vpop.xlane.xlu0 %360
    %v362 = vsel %vm343, %v333, 0.0
    %363 = vadd.xlane.f32.xlu0 %v362
    %v364 = vpop.xlane.xlu0 %363
    %v365 = vsel %vm343, %v334, 0.0
    %366 = vadd.xlane.f32.xlu0 %v365
    %v367 = vpop.xlane.xlu0 %366
    %v368 = vsel %vm343, %v335, 0.0
    %369 = vadd.xlane.f32.xlu0 %v368
    %v370 = vpop.xlane.xlu0 %369
    %v371 = vsel %vm343, %v336, 0.0
    %372 = vadd.xlane.f32.xlu0 %v371
    %v373 = vpop.xlane.xlu0 %372
    %v374 = vsel %vm343, %v337, 0.0
    %375 = vadd.xlane.f32.xlu0 %v374
    %v376 = vpop.xlane.xlu0 %375
    %v377 = vsel %vm343, %v338, 0.0
    %378 = vadd.xlane.f32.xlu0 %v377
    %v379 = vpop.xlane.xlu0 %378
    %v380 = vsel %vm343, %v339, 0.0
    %381 = vadd.xlane.f32.xlu0 %v380
    %v382 = vpop.xlane.xlu0 %381
    %v383 = vsel %vm343, %v340, 0.0
    %384 = vadd.xlane.f32.xlu0 %v383
    %v385 = vpop.xlane.xlu0 %384
    %v386 = vsel %vm343, %v341, 0.0
    %387 = vadd.xlane.f32.xlu0 %v386
    %v388 = vpop.xlane.xlu0 %387
    %v389 = vsel %vm343, %v342, 0.0
    %390 = vadd.xlane.f32.xlu0 %v389
    %v391 = vpop.xlane.xlu0 %390
    %v408 = vlaneseq
    %v409 = vand.u32 %v408, 127
    %v410 = vlaneseq
    %v411 = vshrl.u32 %v410, 7
    %v412 = vsub.s32 %v409, %v411
    %v413 = vrot.slane %v346, %v412
    %v414 = vlaneseq
    %v415 = vshrl.u32 %v414, 7
    %v416 = vsub.s32 %v409, %v415
    %v417 = vrot.slane %v349, %v416
    %v418 = vlaneseq
    %v419 = vshrl.u32 %v418, 7
    %v420 = vsub.s32 %v409, %v419
    %v421 = vrot.slane %v352, %v420
    %v422 = vlaneseq
    %v423 = vshrl.u32 %v422, 7
    %v424 = vsub.s32 %v409, %v423
    %v425 = vrot.slane %v355, %v424
    %v426 = vlaneseq
    %v427 = vshrl.u32 %v426, 7
    %v428 = vsub.s32 %v409, %v427
    %v429 = vrot.slane %v358, %v428
    %v430 = vlaneseq
    %v431 = vshrl.u32 %v430, 7
    %v432 = vsub.s32 %v409, %v431
    %v433 = vrot.slane %v361, %v432
    %v434 = vlaneseq
    %v435 = vshrl.u32 %v434, 7
    %v436 = vsub.s32 %v409, %v435
    %v437 = vrot.slane %v364, %v436
    %v438 = vlaneseq
    %v439 = vshrl.u32 %v438, 7
    %v440 = vsub.s32 %v409, %v439
    %v441 = vrot.slane %v367, %v440
    %v442 = vlaneseq
    %v443 = vshrl.u32 %v442, 7
    %v444 = vsub.s32 %v409, %v443
    %v445 = vrot.slane %v370, %v444
    %v446 = vlaneseq
    %v447 = vshrl.u32 %v446, 7
    %v448 = vsub.s32 %v409, %v447
    %v449 = vrot.slane %v373, %v448
    %v450 = vlaneseq
    %v451 = vshrl.u32 %v450, 7
    %v452 = vsub.s32 %v409, %v451
    %v453 = vrot.slane %v376, %v452
    %v454 = vlaneseq
    %v455 = vshrl.u32 %v454, 7
    %v456 = vsub.s32 %v409, %v455
    %v457 = vrot.slane %v379, %v456
    %v458 = vlaneseq
    %v459 = vshrl.u32 %v458, 7
    %v460 = vsub.s32 %v409, %v459
    %v461 = vrot.slane %v382, %v460
    %v462 = vlaneseq
    %v463 = vshrl.u32 %v462, 7
    %v464 = vsub.s32 %v409, %v463
    %v465 = vrot.slane %v385, %v464
    %v466 = vlaneseq
    %v467 = vshrl.u32 %v466, 7
    %v468 = vsub.s32 %v409, %v467
    %v469 = vrot.slane %v388, %v468
    %v470 = vlaneseq
    %v471 = vshrl.u32 %v470, 7
    %v472 = vsub.s32 %v409, %v471
    %v473 = vrot.slane %v391, %v472
    %vm474 = vcmask 1041409
    %v475 = vsel %vm474, %v417, %v413
    %vm476 = vcmask 1042434
    %v477 = vsel %vm476, %v421, %v475
    %vm478 = vcmask 1043459
    %v479 = vsel %vm478, %v425, %v477
    %vm480 = vcmask 1044484
    %v481 = vsel %vm480, %v429, %v479
    %vm482 = vcmask 1045509
    %v483 = vsel %vm482, %v433, %v481
    %vm484 = vcmask 1046534
    %v485 = vsel %vm484, %v437, %v483
    %vm486 = vcmask 1047559
    %v487 = vsel %vm486, %v441, %v485
    %v488 = vsel %vm474, %v449, %v445
    %v489 = vsel %vm476, %v453, %v488
    %v490 = vsel %vm478, %v457, %v489
    %v491 = vsel %vm480, %v461, %v490
    %v492 = vsel %vm482, %v465, %v491
    %v493 = vsel %vm484, %v469, %v492
    %v494 = vsel %vm486, %v473, %v493
    %vm497 = vcmask 64512
    %v498 = vsel %vm497, %v487, -inf
    %499 = vmax.xlane.f32.xlu0 %v498
    %v500 = vpop.xlane.xlu0 %499
    %v501 = vsel %vm497, %v494, -inf
    %502 = vmax.xlane.f32.xlu0 %v501
    %v503 = vpop.xlane.xlu0 %502
    %v506 = vlaneseq
    %v507 = vshrl.u32 %v506, 7
    %v508 = vsub.s32 0, %v507
    %v509 = vrot.slane %v500, %v508
    %v510 = vlaneseq
    %v511 = vshrl.u32 %v510, 7
    %v512 = vsub.s32 1, %v511
    %v513 = vrot.slane %v500, %v512
    %v514 = vlaneseq
    %v515 = vshrl.u32 %v514, 7
    %v516 = vsub.s32 2, %v515
    %v517 = vrot.slane %v500, %v516
    %v518 = vlaneseq
    %v519 = vshrl.u32 %v518, 7
    %v520 = vsub.s32 3, %v519
    %v521 = vrot.slane %v500, %v520
    %v522 = vlaneseq
    %v523 = vshrl.u32 %v522, 7
    %v524 = vsub.s32 4, %v523
    %v525 = vrot.slane %v500, %v524
    %v526 = vlaneseq
    %v527 = vshrl.u32 %v526, 7
    %v528 = vsub.s32 5, %v527
    %v529 = vrot.slane %v500, %v528
    %v530 = vlaneseq
    %v531 = vshrl.u32 %v530, 7
    %v532 = vsub.s32 6, %v531
    %v533 = vrot.slane %v500, %v532
    %v534 = vlaneseq
    %v535 = vshrl.u32 %v534, 7
    %v536 = vsub.s32 7, %v535
    %v537 = vrot.slane %v500, %v536
    %v538 = vlaneseq
    %v539 = vshrl.u32 %v538, 7
    %v540 = vsub.s32 0, %v539
    %v541 = vrot.slane %v503, %v540
    %v542 = vlaneseq
    %v543 = vshrl.u32 %v542, 7
    %v544 = vsub.s32 1, %v543
    %v545 = vrot.slane %v503, %v544
    %v546 = vlaneseq
    %v547 = vshrl.u32 %v546, 7
    %v548 = vsub.s32 2, %v547
    %v549 = vrot.slane %v503, %v548
    %v550 = vlaneseq
    %v551 = vshrl.u32 %v550, 7
    %v552 = vsub.s32 3, %v551
    %v553 = vrot.slane %v503, %v552
    %v554 = vlaneseq
    %v555 = vshrl.u32 %v554, 7
    %v556 = vsub.s32 4, %v555
    %v557 = vrot.slane %v503, %v556
    %v558 = vlaneseq
    %v559 = vshrl.u32 %v558, 7
    %v560 = vsub.s32 5, %v559
    %v561 = vrot.slane %v503, %v560
    %v562 = vlaneseq
    %v563 = vshrl.u32 %v562, 7
    %v564 = vsub.s32 6, %v563
    %v565 = vrot.slane %v503, %v564
    %v566 = vlaneseq
    %v567 = vshrl.u32 %v566, 7
    %v568 = vsub.s32 7, %v567
    %v569 = vrot.slane %v503, %v568
    %v586 = vsub.f32 %v346, %v509
    %v587 = vsub.f32 %v349, %v513
    %v588 = vsub.f32 %v352, %v517
    %v589 = vsub.f32 %v355, %v521
    %v590 = vsub.f32 %v358, %v525
    %v591 = vsub.f32 %v361, %v529
    %v592 = vsub.f32 %v364, %v533
    %v593 = vsub.f32 %v367, %v537
    %v594 = vsub.f32 %v370, %v541
    %v595 = vsub.f32 %v373, %v545
    %v596 = vsub.f32 %v376, %v549
    %v597 = vsub.f32 %v379, %v553
    %v598 = vsub.f32 %v382, %v557
    %v599 = vsub.f32 %v385, %v561
    %v600 = vsub.f32 %v388, %v565
    %v601 = vsub.f32 %v391, %v569
    %v602 = vmul.f32 %v586, 1.442695
    %v603 = vpow.pop %v602
    %v604 = vmul.f32 %v587, 1.442695
    %v605 = vpow.pop %v604
    %v606 = vmul.f32 %v588, 1.442695
    %v607 = vpow.pop %v606
    %v608 = vmul.f32 %v589, 1.442695
    %v609 = vpow.pop %v608
    %v610 = vmul.f32 %v590, 1.442695
    %v611 = vpow.pop %v610
    %v612 = vmul.f32 %v591, 1.442695
    %v613 = vpow.pop %v612
    %v614 = vmul.f32 %v592, 1.442695
    %v615 = vpow.pop %v614
    %v616 = vmul.f32 %v593, 1.442695
    %v617 = vpow.pop %v616
    %v618 = vmul.f32 %v594, 1.442695
    %v619 = vpow.pop %v618
    %v620 = vmul.f32 %v595, 1.442695
    %v621 = vpow.pop %v620
    %v622 = vmul.f32 %v596, 1.442695
    %v623 = vpow.pop %v622
    %v624 = vmul.f32 %v597, 1.442695
    %v625 = vpow.pop %v624
    %v626 = vmul.f32 %v598, 1.442695
    %v627 = vpow.pop %v626
    %v628 = vmul.f32 %v599, 1.442695
    %v629 = vpow.pop %v628
    %v630 = vmul.f32 %v600, 1.442695
    %v631 = vpow.pop %v630
    %v632 = vmul.f32 %v601, 1.442695
    %v633 = vpow.pop %v632
    %650 = vset.pattern.permute.xlu0 0
    %651 = vperm.xlu0 %650, %v603
    %v652 = vpop.permute.xlu0 %651
    %653 = vset.pattern.permute.xlu0 0
    %654 = vperm.xlu0 %653, %v605
    %v655 = vpop.permute.xlu0 %654
    %656 = vset.pattern.permute.xlu0 0
    %657 = vperm.xlu0 %656, %v607
    %v658 = vpop.permute.xlu0 %657
    %659 = vset.pattern.permute.xlu0 0
    %660 = vperm.xlu0 %659, %v609
    %v661 = vpop.permute.xlu0 %660
    %662 = vset.pattern.permute.xlu0 0
    %663 = vperm.xlu0 %662, %v611
    %v664 = vpop.permute.xlu0 %663
    %665 = vset.pattern.permute.xlu0 0
    %666 = vperm.xlu0 %665, %v613
    %v667 = vpop.permute.xlu0 %666
    %668 = vset.pattern.permute.xlu0 0
    %669 = vperm.xlu0 %668, %v615
    %v670 = vpop.permute.xlu0 %669
    %671 = vset.pattern.permute.xlu0 0
    %672 = vperm.xlu0 %671, %v617
    %v673 = vpop.permute.xlu0 %672
    %674 = vset.pattern.permute.xlu0 0
    %675 = vperm.xlu0 %674, %v619
    %v676 = vpop.permute.xlu0 %675
    %677 = vset.pattern.permute.xlu0 0
    %678 = vperm.xlu0 %677, %v621
    %v679 = vpop.permute.xlu0 %678
    %680 = vset.pattern.permute.xlu0 0
    %681 = vperm.xlu0 %680, %v623
    %v682 = vpop.permute.xlu0 %681
    %683 = vset.pattern.permute.xlu0 0
    %684 = vperm.xlu0 %683, %v625
    %v685 = vpop.permute.xlu0 %684
    %686 = vset.pattern.permute.xlu0 0
    %687 = vperm.xlu0 %686, %v627
    %v688 = vpop.permute.xlu0 %687
    %689 = vset.pattern.permute.xlu0 0
    %690 = vperm.xlu0 %689, %v629
    %v691 = vpop.permute.xlu0 %690
    %692 = vset.pattern.permute.xlu0 0
    %693 = vperm.xlu0 %692, %v631
    %v694 = vpop.permute.xlu0 %693
    %695 = vset.pattern.permute.xlu0 0
    %696 = vperm.xlu0 %695, %v633
    %v697 = vpop.permute.xlu0 %696
    %v698 = vlaneseq
    %v699 = vshrl.u32 %v698, 7
    %v700 = vsub.s32 %v409, %v699
    %v701 = vrot.slane %v652, %v700
    %v702 = vlaneseq
    %v703 = vshrl.u32 %v702, 7
    %v704 = vsub.s32 %v409, %v703
    %v705 = vrot.slane %v655, %v704
    %v706 = vlaneseq
    %v707 = vshrl.u32 %v706, 7
    %v708 = vsub.s32 %v409, %v707
    %v709 = vrot.slane %v658, %v708
    %v710 = vlaneseq
    %v711 = vshrl.u32 %v710, 7
    %v712 = vsub.s32 %v409, %v711
    %v713 = vrot.slane %v661, %v712
    %v714 = vlaneseq
    %v715 = vshrl.u32 %v714, 7
    %v716 = vsub.s32 %v409, %v715
    %v717 = vrot.slane %v664, %v716
    %v718 = vlaneseq
    %v719 = vshrl.u32 %v718, 7
    %v720 = vsub.s32 %v409, %v719
    %v721 = vrot.slane %v667, %v720
    %v722 = vlaneseq
    %v723 = vshrl.u32 %v722, 7
    %v724 = vsub.s32 %v409, %v723
    %v725 = vrot.slane %v670, %v724
    %v726 = vlaneseq
    %v727 = vshrl.u32 %v726, 7
    %v728 = vsub.s32 %v409, %v727
    %v729 = vrot.slane %v673, %v728
    %v730 = vlaneseq
    %v731 = vshrl.u32 %v730, 7
    %v732 = vsub.s32 %v409, %v731
    %v733 = vrot.slane %v676, %v732
    %v734 = vlaneseq
    %v735 = vshrl.u32 %v734, 7
    %v736 = vsub.s32 %v409, %v735
    %v737 = vrot.slane %v679, %v736
    %v738 = vlaneseq
    %v739 = vshrl.u32 %v738, 7
    %v740 = vsub.s32 %v409, %v739
    %v741 = vrot.slane %v682, %v740
    %v742 = vlaneseq
    %v743 = vshrl.u32 %v742, 7
    %v744 = vsub.s32 %v409, %v743
    %v745 = vrot.slane %v685, %v744
    %v746 = vlaneseq
    %v747 = vshrl.u32 %v746, 7
    %v748 = vsub.s32 %v409, %v747
    %v749 = vrot.slane %v688, %v748
    %v750 = vlaneseq
    %v751 = vshrl.u32 %v750, 7
    %v752 = vsub.s32 %v409, %v751
    %v753 = vrot.slane %v691, %v752
    %v754 = vlaneseq
    %v755 = vshrl.u32 %v754, 7
    %v756 = vsub.s32 %v409, %v755
    %v757 = vrot.slane %v694, %v756
    %v758 = vlaneseq
    %v759 = vshrl.u32 %v758, 7
    %v760 = vsub.s32 %v409, %v759
    %v761 = vrot.slane %v697, %v760
    %v762 = vsel %vm474, %v705, %v701
    %v763 = vsel %vm476, %v709, %v762
    %v764 = vsel %vm478, %v713, %v763
    %v765 = vsel %vm480, %v717, %v764
    %v766 = vsel %vm482, %v721, %v765
    %v767 = vsel %vm484, %v725, %v766
    %v768 = vsel %vm486, %v729, %v767
    %v769 = vsel %vm474, %v737, %v733
    %v770 = vsel %vm476, %v741, %v769
    %v771 = vsel %vm478, %v745, %v770
    %v772 = vsel %vm480, %v749, %v771
    %v773 = vsel %vm482, %v753, %v772
    %v774 = vsel %vm484, %v757, %v773
    %v775 = vsel %vm486, %v761, %v774
    %v778 = vsel %vm497, %v768, 0.0
    %779 = vadd.xlane.f32.xlu0 %v778
    %v780 = vpop.xlane.xlu0 %779
    %v781 = vsel %vm497, %v775, 0.0
    %782 = vadd.xlane.f32.xlu0 %v781
    %v783 = vpop.xlane.xlu0 %782
    %v786 = vlaneseq
    %v787 = vshrl.u32 %v786, 7
    %v788 = vsub.s32 0, %v787
    %v789 = vrot.slane %v780, %v788
    %v790 = vlaneseq
    %v791 = vshrl.u32 %v790, 7
    %v792 = vsub.s32 1, %v791
    %v793 = vrot.slane %v780, %v792
    %v794 = vlaneseq
    %v795 = vshrl.u32 %v794, 7
    %v796 = vsub.s32 2, %v795
    %v797 = vrot.slane %v780, %v796
    %v798 = vlaneseq
    %v799 = vshrl.u32 %v798, 7
    %v800 = vsub.s32 3, %v799
    %v801 = vrot.slane %v780, %v800
    %v802 = vlaneseq
    %v803 = vshrl.u32 %v802, 7
    %v804 = vsub.s32 4, %v803
    %v805 = vrot.slane %v780, %v804
    %v806 = vlaneseq
    %v807 = vshrl.u32 %v806, 7
    %v808 = vsub.s32 5, %v807
    %v809 = vrot.slane %v780, %v808
    %v810 = vlaneseq
    %v811 = vshrl.u32 %v810, 7
    %v812 = vsub.s32 6, %v811
    %v813 = vrot.slane %v780, %v812
    %v814 = vlaneseq
    %v815 = vshrl.u32 %v814, 7
    %v816 = vsub.s32 7, %v815
    %v817 = vrot.slane %v780, %v816
    %v818 = vlaneseq
    %v819 = vshrl.u32 %v818, 7
    %v820 = vsub.s32 0, %v819
    %v821 = vrot.slane %v783, %v820
    %v822 = vlaneseq
    %v823 = vshrl.u32 %v822, 7
    %v824 = vsub.s32 1, %v823
    %v825 = vrot.slane %v783, %v824
    %v826 = vlaneseq
    %v827 = vshrl.u32 %v826, 7
    %v828 = vsub.s32 2, %v827
    %v829 = vrot.slane %v783, %v828
    %v830 = vlaneseq
    %v831 = vshrl.u32 %v830, 7
    %v832 = vsub.s32 3, %v831
    %v833 = vrot.slane %v783, %v832
    %v834 = vlaneseq
    %v835 = vshrl.u32 %v834, 7
    %v836 = vsub.s32 4, %v835
    %v837 = vrot.slane %v783, %v836
    %v838 = vlaneseq
    %v839 = vshrl.u32 %v838, 7
    %v840 = vsub.s32 5, %v839
    %v841 = vrot.slane %v783, %v840
    %v842 = vlaneseq
    %v843 = vshrl.u32 %v842, 7
    %v844 = vsub.s32 6, %v843
    %v845 = vrot.slane %v783, %v844
    %v846 = vlaneseq
    %v847 = vshrl.u32 %v846, 7
    %v848 = vsub.s32 7, %v847
    %v849 = vrot.slane %v783, %v848
    %v866 = vrcp.pop %v789
    %v867 = vmul.f32 %v603, %v866
    %v868 = vrcp.pop %v793
    %v869 = vmul.f32 %v605, %v868
    %v870 = vrcp.pop %v797
    %v871 = vmul.f32 %v607, %v870
    %v872 = vrcp.pop %v801
    %v873 = vmul.f32 %v609, %v872
    %v874 = vrcp.pop %v805
    %v875 = vmul.f32 %v611, %v874
    %v876 = vrcp.pop %v809
    %v877 = vmul.f32 %v613, %v876
    %v878 = vrcp.pop %v813
    %v879 = vmul.f32 %v615, %v878
    %v880 = vrcp.pop %v817
    %v881 = vmul.f32 %v617, %v880
    %v882 = vrcp.pop %v821
    %v883 = vmul.f32 %v619, %v882
    %v884 = vrcp.pop %v825
    %v885 = vmul.f32 %v621, %v884
    %v886 = vrcp.pop %v829
    %v887 = vmul.f32 %v623, %v886
    %v888 = vrcp.pop %v833
    %v889 = vmul.f32 %v625, %v888
    %v890 = vrcp.pop %v837
    %v891 = vmul.f32 %v627, %v890
    %v892 = vrcp.pop %v841
    %v893 = vmul.f32 %v629, %v892
    %v894 = vrcp.pop %v845
    %v895 = vmul.f32 %v631, %v894
    %v896 = vrcp.pop %v849
    %v897 = vmul.f32 %v633, %v896
    %906 = vset.pattern.permute.xlu0 0
    %907 = vperm.xlu0 %906, %v867
    %v908 = vpop.permute.xlu0 %907
    %909 = vset.pattern.permute.xlu0 0
    %910 = vperm.xlu0 %909, %v869
    %v911 = vpop.permute.xlu0 %910
    %912 = vset.pattern.permute.xlu0 0
    %913 = vperm.xlu0 %912, %v871
    %v914 = vpop.permute.xlu0 %913
    %915 = vset.pattern.permute.xlu0 0
    %916 = vperm.xlu0 %915, %v873
    %v917 = vpop.permute.xlu0 %916
    %918 = vset.pattern.permute.xlu0 0
    %919 = vperm.xlu0 %918, %v875
    %v920 = vpop.permute.xlu0 %919
    %921 = vset.pattern.permute.xlu0 0
    %922 = vperm.xlu0 %921, %v877
    %v923 = vpop.permute.xlu0 %922
    %924 = vset.pattern.permute.xlu0 0
    %925 = vperm.xlu0 %924, %v879
    %v926 = vpop.permute.xlu0 %925
    %927 = vset.pattern.permute.xlu0 0
    %928 = vperm.xlu0 %927, %v881
    %v929 = vpop.permute.xlu0 %928
    %v930 = vlaneseq
    %v931 = vshrl.u32 %v930, 7
    %v932 = vsub.s32 %v409, %v931
    %v933 = vrot.slane %v908, %v932
    %v934 = vlaneseq
    %v935 = vshrl.u32 %v934, 7
    %v936 = vsub.s32 %v409, %v935
    %v937 = vrot.slane %v911, %v936
    %v938 = vlaneseq
    %v939 = vshrl.u32 %v938, 7
    %v940 = vsub.s32 %v409, %v939
    %v941 = vrot.slane %v914, %v940
    %v942 = vlaneseq
    %v943 = vshrl.u32 %v942, 7
    %v944 = vsub.s32 %v409, %v943
    %v945 = vrot.slane %v917, %v944
    %v946 = vlaneseq
    %v947 = vshrl.u32 %v946, 7
    %v948 = vsub.s32 %v409, %v947
    %v949 = vrot.slane %v920, %v948
    %v950 = vlaneseq
    %v951 = vshrl.u32 %v950, 7
    %v952 = vsub.s32 %v409, %v951
    %v953 = vrot.slane %v923, %v952
    %v954 = vlaneseq
    %v955 = vshrl.u32 %v954, 7
    %v956 = vsub.s32 %v409, %v955
    %v957 = vrot.slane %v926, %v956
    %v958 = vlaneseq
    %v959 = vshrl.u32 %v958, 7
    %v960 = vsub.s32 %v409, %v959
    %v961 = vrot.slane %v929, %v960
    %v962 = vsel %vm474, %v937, %v933
    %v963 = vsel %vm476, %v941, %v962
    %v964 = vsel %vm478, %v945, %v963
    %v965 = vsel %vm480, %v949, %v964
    %v966 = vsel %vm482, %v953, %v965
    %v967 = vsel %vm484, %v957, %v966
    %v968 = vsel %vm486, %v961, %v967
    %v969 = vsel %vm497, %v968, 0
    %971 = vmatprep.subr.mxu0 0.0
    %972 = vmatpush1.msra.mxu0 %v15
    %973 = vmatprep.subr.mxu0 0.0
    %974 = vmatpush1.msra.mxu0 0.0
    %975 = vmatprep.subr.mxu0 0.0
    %976 = vmatpush1.msra.mxu0 0.0
    %977 = vmatprep.subr.mxu0 0.0
    %978 = vmatpush1.msra.mxu0 0.0
    %979 = vmatprep.subr.mxu0 0.0
    %980 = vmatpush1.msra.mxu0 0.0
    %981 = vmatprep.subr.mxu0 0.0
    %982 = vmatpush1.msra.mxu0 0.0
    %983 = vmatprep.subr.mxu0 0.0
    %984 = vmatpush1.msra.mxu0 0.0
    %985 = vmatprep.subr.mxu0 0.0
    %986 = vmatpush1.msra.mxu0 0.0
    %987 = vmatprep.subr.mxu0 0.0
    %988 = vmatpush1.msra.mxu0 0.0
    %989 = vmatprep.subr.mxu0 0.0
    %990 = vmatpush1.msra.mxu0 0.0
    %991 = vmatprep.subr.mxu0 0.0
    %992 = vmatpush1.msra.mxu0 0.0
    %993 = vmatprep.subr.mxu0 0.0
    %994 = vmatpush1.msra.mxu0 0.0
    %995 = vmatprep.subr.mxu0 0.0
    %996 = vmatpush1.msra.mxu0 0.0
    %997 = vmatprep.subr.mxu0 0.0
    %998 = vmatpush1.msra.mxu0 0.0
    %999 = vmatprep.subr.mxu0 0.0
    %1000 = vmatpush1.msra.mxu0 0.0
    %1001 = vmatprep.subr.mxu0 0.0
    %1002 = vmatpush1.msra.mxu0 0.0
    %1003 = vmatprep.subr.mxu0 0.0
    %1004 = vmatpush1.msra.mxu0 0.0
    %1005 = vmatprep.subr.mxu0 0.0
    %1006 = vmatpush1.msra.mxu0 0.0
    %1007 = vmatprep.subr.mxu0 0.0
    %1008 = vmatpush1.msra.mxu0 0.0
    %1009 = vmatprep.subr.mxu0 0.0
    %1010 = vmatpush1.msra.mxu0 0.0
    %1011 = vmatprep.subr.mxu0 0.0
    %1012 = vmatpush1.msra.mxu0 0.0
    %1013 = vmatprep.subr.mxu0 0.0
    %1014 = vmatpush1.msra.mxu0 0.0
    %1015 = vmatprep.subr.mxu0 0.0
    %1016 = vmatpush1.msra.mxu0 0.0
    %1017 = vmatprep.subr.mxu0 0.0
    %1018 = vmatpush1.msra.mxu0 0.0
    %1019 = vmatprep.subr.mxu0 0.0
    %1020 = vmatpush1.msra.mxu0 0.0
    %1021 = vmatprep.subr.mxu0 0.0
    %1022 = vmatpush1.msra.mxu0 0.0
    %1023 = vmatprep.subr.mxu0 0.0
    %1024 = vmatpush1.msra.mxu0 0.0
    %1025 = vmatprep.subr.mxu0 0.0
    %1026 = vmatpush1.msra.mxu0 0.0
    %1027 = vmatprep.subr.mxu0 0.0
    %1028 = vmatpush1.msra.mxu0 0.0
    %1029 = vmatprep.subr.mxu0 0.0
    %1030 = vmatpush1.msra.mxu0 0.0
    %1031 = vmatprep.subr.mxu0 0.0
    %1032 = vmatpush1.msra.mxu0 0.0
    %1033 = vmatprep.subr.mxu0 0.0
    %1034 = vmatpush1.msra.mxu0 0.0
    %1035 = vmatprep.mubr.f32.mxu0 0.0
    %1036 = vmatmul.mubr.f32.gmra.mrb[0].mxu0 %v969
    %v1037 = vpop.f32.mrb[0].mxu0
    %v1038 = vadd.f32 0.0, %v1037
    %v1039 = vpop.f32.mrb[0].mxu0
    %1040 = vdwg.mxu0
    %1049 = vset.pattern.permute.xlu0 0
    %1050 = vperm.xlu0 %1049, %v883
    %v1051 = vpop.permute.xlu0 %1050
    %1052 = vset.pattern.permute.xlu0 0
    %1053 = vperm.xlu0 %1052, %v885
    %v1054 = vpop.permute.xlu0 %1053
    %1055 = vset.pattern.permute.xlu0 0
    %1056 = vperm.xlu0 %1055, %v887
    %v1057 = vpop.permute.xlu0 %1056
    %1058 = vset.pattern.permute.xlu0 0
    %1059 = vperm.xlu0 %1058, %v889
    %v1060 = vpop.permute.xlu0 %1059
    %1061 = vset.pattern.permute.xlu0 0
    %1062 = vperm.xlu0 %1061, %v891
    %v1063 = vpop.permute.xlu0 %1062
    %1064 = vset.pattern.permute.xlu0 0
    %1065 = vperm.xlu0 %1064, %v893
    %v1066 = vpop.permute.xlu0 %1065
    %1067 = vset.pattern.permute.xlu0 0
    %1068 = vperm.xlu0 %1067, %v895
    %v1069 = vpop.permute.xlu0 %1068
    %1070 = vset.pattern.permute.xlu0 0
    %1071 = vperm.xlu0 %1070, %v897
    %v1072 = vpop.permute.xlu0 %1071
    %v1073 = vlaneseq
    %v1074 = vshrl.u32 %v1073, 7
    %v1075 = vsub.s32 %v409, %v1074
    %v1076 = vrot.slane %v1051, %v1075
    %v1077 = vlaneseq
    %v1078 = vshrl.u32 %v1077, 7
    %v1079 = vsub.s32 %v409, %v1078
    %v1080 = vrot.slane %v1054, %v1079
    %v1081 = vlaneseq
    %v1082 = vshrl.u32 %v1081, 7
    %v1083 = vsub.s32 %v409, %v1082
    %v1084 = vrot.slane %v1057, %v1083
    %v1085 = vlaneseq
    %v1086 = vshrl.u32 %v1085, 7
    %v1087 = vsub.s32 %v409, %v1086
    %v1088 = vrot.slane %v1060, %v1087
    %v1089 = vlaneseq
    %v1090 = vshrl.u32 %v1089, 7
    %v1091 = vsub.s32 %v409, %v1090
    %v1092 = vrot.slane %v1063, %v1091
    %v1093 = vlaneseq
    %v1094 = vshrl.u32 %v1093, 7
    %v1095 = vsub.s32 %v409, %v1094
    %v1096 = vrot.slane %v1066, %v1095
    %v1097 = vlaneseq
    %v1098 = vshrl.u32 %v1097, 7
    %v1099 = vsub.s32 %v409, %v1098
    %v1100 = vrot.slane %v1069, %v1099
    %v1101 = vlaneseq
    %v1102 = vshrl.u32 %v1101, 7
    %v1103 = vsub.s32 %v409, %v1102
    %v1104 = vrot.slane %v1072, %v1103
    %v1105 = vsel %vm474, %v1080, %v1076
    %v1106 = vsel %vm476, %v1084, %v1105
    %v1107 = vsel %vm478, %v1088, %v1106
    %v1108 = vsel %vm480, %v1092, %v1107
    %v1109 = vsel %vm482, %v1096, %v1108
    %v1110 = vsel %vm484, %v1100, %v1109
    %v1111 = vsel %vm486, %v1104, %v1110
    %v1112 = vsel %vm497, %v1111, 0
    %1114 = vmatprep.subr.mxu0 0.0
    %1115 = vmatpush1.msra.mxu0 %v16
    %1116 = vmatprep.subr.mxu0 0.0
    %1117 = vmatpush1.msra.mxu0 0.0
    %1118 = vmatprep.subr.mxu0 0.0
    %1119 = vmatpush1.msra.mxu0 0.0
    %1120 = vmatprep.subr.mxu0 0.0
    %1121 = vmatpush1.msra.mxu0 0.0
    %1122 = vmatprep.subr.mxu0 0.0
    %1123 = vmatpush1.msra.mxu0 0.0
    %1124 = vmatprep.subr.mxu0 0.0
    %1125 = vmatpush1.msra.mxu0 0.0
    %1126 = vmatprep.subr.mxu0 0.0
    %1127 = vmatpush1.msra.mxu0 0.0
    %1128 = vmatprep.subr.mxu0 0.0
    %1129 = vmatpush1.msra.mxu0 0.0
    %1130 = vmatprep.subr.mxu0 0.0
    %1131 = vmatpush1.msra.mxu0 0.0
    %1132 = vmatprep.subr.mxu0 0.0
    %1133 = vmatpush1.msra.mxu0 0.0
    %1134 = vmatprep.subr.mxu0 0.0
    %1135 = vmatpush1.msra.mxu0 0.0
    %1136 = vmatprep.subr.mxu0 0.0
    %1137 = vmatpush1.msra.mxu0 0.0
    %1138 = vmatprep.subr.mxu0 0.0
    %1139 = vmatpush1.msra.mxu0 0.0
    %1140 = vmatprep.subr.mxu0 0.0
    %1141 = vmatpush1.msra.mxu0 0.0
    %1142 = vmatprep.subr.mxu0 0.0
    %1143 = vmatpush1.msra.mxu0 0.0
    %1144 = vmatprep.subr.mxu0 0.0
    %1145 = vmatpush1.msra.mxu0 0.0
    %1146 = vmatprep.subr.mxu0 0.0
    %1147 = vmatpush1.msra.mxu0 0.0
    %1148 = vmatprep.subr.mxu0 0.0
    %1149 = vmatpush1.msra.mxu0 0.0
    %1150 = vmatprep.subr.mxu0 0.0
    %1151 = vmatpush1.msra.mxu0 0.0
    %1152 = vmatprep.subr.mxu0 0.0
    %1153 = vmatpush1.msra.mxu0 0.0
    %1154 = vmatprep.subr.mxu0 0.0
    %1155 = vmatpush1.msra.mxu0 0.0
    %1156 = vmatprep.subr.mxu0 0.0
    %1157 = vmatpush1.msra.mxu0 0.0
    %1158 = vmatprep.subr.mxu0 0.0
    %1159 = vmatpush1.msra.mxu0 0.0
    %1160 = vmatprep.subr.mxu0 0.0
    %1161 = vmatpush1.msra.mxu0 0.0
    %1162 = vmatprep.subr.mxu0 0.0
    %1163 = vmatpush1.msra.mxu0 0.0
    %1164 = vmatprep.subr.mxu0 0.0
    %1165 = vmatpush1.msra.mxu0 0.0
    %1166 = vmatprep.subr.mxu0 0.0
    %1167 = vmatpush1.msra.mxu0 0.0
    %1168 = vmatprep.subr.mxu0 0.0
    %1169 = vmatpush1.msra.mxu0 0.0
    %1170 = vmatprep.subr.mxu0 0.0
    %1171 = vmatpush1.msra.mxu0 0.0
    %1172 = vmatprep.subr.mxu0 0.0
    %1173 = vmatpush1.msra.mxu0 0.0
    %1174 = vmatprep.subr.mxu0 0.0
    %1175 = vmatpush1.msra.mxu0 0.0
    %1176 = vmatprep.subr.mxu0 0.0
    %1177 = vmatpush1.msra.mxu0 0.0
    %1178 = vmatprep.mubr.f32.mxu0 0.0
    %1179 = vmatmul.mubr.f32.gmra.mrb[0].mxu0 %v1112
    %v1180 = vpop.f32.mrb[0].mxu0
    %v1181 = vadd.f32 0.0, %v1180
    %v1182 = vpop.f32.mrb[0].mxu0
    %1183 = vdwg.mxu0
    %1184 = vst [vmem:[#allocation2] sm:$0xff] %v1038
    %1185 = vst [vmem:[#allocation2 + $0x8] sm:$0xff] %v1181
    // Predicated region
    $region14: #{tpu_custom_call.1} parent=1 // pred_check
      _
    $region15: #{tpu_custom_call.1} parent=1 // pred_check_branch
      %1187 = sbr.rel (0) target = $region17
    $region16: #{tpu_custom_call.1} parent=1 // pred_region
      %s1189 = ssub.s32 256, 256
      %1190 = vsyncadd [#allocation3], %s1189
      %s1191 = sshll.u32 [#allocation2], 4
      %s1192 = int_to_ptr.vmem [resolvable:$true] %s1191
      %1197 = dma.vmem_to_hbm [thread:$0]  %s1192, 256, %s3, [#allocation3], 128, 128, 8
    $region17: #{tpu_custom_call.1} parent=1 // pred_fallthru
      _
    // Predicated region
    $region18: #{tpu_custom_call.1} parent=1 // pred_check
      _
    $region19: #{tpu_custom_call.1} parent=1 // pred_check_branch
      %1199 = sbr.rel (0) target = $region21
    $region20: #{tpu_custom_call.1} parent=1 // pred_region
      %1200 = dma.done [#allocation3], 256
    $region21: #{tpu_custom_call.1} parent=1 // pred_fallthru
      _
    %1201 = vsyncpa [#allocation3], 1

</llo_original>
